<compile_context>
chip_gen: v5e
topology: v5e:2x2
jax: 0.10.0
libtpu: 0.0.40
codegen_flags: <defaults>
</compile_context>

<pallas_src>
import jax
import jax.numpy as jnp
from jax.experimental import pallas as pl
from jax.experimental.pallas import tpu as pltpu


# ----------------------------- model config ---------------------------------
EMB_DIM = 8                         # per-field embedding dim (D)
DEEP_EMB_INPUTS = [                 # (name, vocab_size, emb_dim)
    ("cat_a", 10, EMB_DIM),
    ("cat_b", 12, EMB_DIM),
    ("cat_c", 7, EMB_DIM),
    ("cat_d", 5, EMB_DIM),
]
DEEP_CONTINUOUS_COLS = ["cont_x", "cont_y", "cont_z"]
DEEP_COLUMN_IDX = {
    "cont_x": 0, "cont_y": 1, "cont_z": 2,
    "cat_a": 3, "cat_b": 4, "cat_c": 5, "cat_d": 6,
}
DEEP_HIDDEN_DIMS = [32, 16]
K_DIM = 100                         # FMLayer k_dim

N_FIELDS = len(DEEP_EMB_INPUTS)                 # F = 4
N_CONT = len(DEEP_CONTINUOUS_COLS)              # C = 3
EMB_OUT_DIM = N_FIELDS * EMB_DIM                # E = 32
NUM_COLS = len(DEEP_COLUMN_IDX)                 # softmax scale = 7
H1, H2 = DEEP_HIDDEN_DIMS

# ----------------------------- kernel layout constants ----------------------
# activation slab rows (emb first so the FM/x2 path is a clean [0:32) slice):
#   [ emb(32) | cont(3) | 1 | zeros(28) ]
XP = 64                             # padded activation rows
ONES_ROW = EMB_OUT_DIM + N_CONT     # 35: constant-1 row (carries biases)
W1T_ROWS = 40                       # H1(32) + carried-one row, padded to sublane mult.
LIN_ROW = 104                       # K_DIM(100) padded to a sublane multiple
RB_ROWS = LIN_ROW + 8               # 112: V^T rows + linear row + zero pad
MAX_TILE_B = 2048                   # lane-dense batch tile cap


# ----------------------------- kernel ----------------------------------------
def _ifm_kernel(x_ref, w1t_ref, w2t_ref, wpt_ref, rbt_ref, rep_ref, keep_ref,
                dcol_ref, o_ref):
    """Fused IFM forward on one batch tile (batch on lanes).

    x_ref:    (XP, T)  bf16   x^T rows: [emb(32) | cont(3) | 1 | zeros]
    w1t_ref:  (40, 64) f32    W1^T (+b1 on the ones row, carried-one row H1)  (resident)
    w2t_ref:  (16, 40) f32    W2^T (+b2 column picking up h1's carried one)   (resident)
    wpt_ref:  (4, 16)  f32    transform_p^T                                   (resident)
    rbt_ref:  (112,64) bf16   [V^T ; zero pad ; linear row (wl_emb|wl_cont|bl)](resident)
    rep_ref:  (64, 4)  f32    0/1 field-repeat matrix (emb rows only)         (resident)
    keep_ref: (64, 1)  f32    1.0 on cont + ones rows, else 0                 (resident)
    dcol_ref: (32, 1)  f32    d_e = sum_k v_ek^2                              (resident)
    o_ref:    (1, T)   f32    logits, lane-dense (batch on lanes)
    """
    x = x_ref[...].astype(jnp.float32)                                    # (XP, T)

    # factor_estimating_net (dropout = identity, eval).  Biases ride on the
    # constant-1 row of x; h1 row H1 stays == 1 to carry b2 into layer 2.  f32 MXU.
    h1 = jnp.maximum(jnp.dot(w1t_ref[...], x,
                             preferred_element_type=jnp.float32), 0.0)    # (40, T)
    h2 = jnp.maximum(jnp.dot(w2t_ref[...], h1,
                             preferred_element_type=jnp.float32), 0.0)    # (16, T)
    p = jnp.dot(wpt_ref[...], h2, preferred_element_type=jnp.float32)     # (F, T)

    # input-aware factor: NUM_COLS * softmax over fields (sublane axis), all f32.
    p = p - jnp.max(p, axis=0, keepdims=True)
    e = jnp.exp(p)
    inv = pl.reciprocal(jnp.sum(e, axis=0, keepdims=True), approx=False)  # exact
    factor = jnp.float32(NUM_COLS) * e * inv                              # (F, T)

    # Per-row scale from resident constants: emb rows -> their field's factor,
    # cont rows + ones row -> 1, pad rows -> 0 (their x is 0 anyway).
    scale = jnp.dot(rep_ref[...], factor,
                    preferred_element_type=jnp.float32) + keep_ref[...]   # (XP, T)
    xs = x * scale                               # rows: [fm_inputs | cont | 1 | 0-pad]

    # FM first half + final linear layer fused into ONE bf16 MXU matmul:
    #   rows 0..99  : (fm_inputs @ V)_k        rows 100..103 : 0
    #   row  104    : linear logits            rows 105..111 : 0
    big = jnp.dot(rbt_ref[...], xs.astype(jnp.bfloat16),
                  preferred_element_type=jnp.float32)                     # (112, T)
    xv = big[0:LIN_ROW, :]
    lin = jnp.sum(big[LIN_ROW:RB_ROWS, :], axis=0, keepdims=True)         # (1, T)

    # FM second half collapsed to a precomputed column sum (f32 VPU + reduce):
    #   sum_k (fm_inputs^2 @ V^2)_k == sum_e d_e * fm_inputs_e^2
    xs_emb = xs[0:EMB_OUT_DIM, :]                                         # (32, T)
    x2 = jnp.sum(dcol_ref[...] * xs_emb * xs_emb, axis=0, keepdims=True)  # (1, T)

    o_ref[...] = 0.5 * (jnp.sum(xv * xv, axis=0, keepdims=True) - x2) + lin


# ----------------------------- pallas wrapper --------------------------------
def _round_up(n, m):
    return ((n + m - 1) // m) * m


def _pick_tile(batch):
    """Lane-dense batch tile: small batches -> one block; large batches -> an even
    number of blocks (v7x megacore splits them evenly) with minimal padding,
    capped at MAX_TILE_B lanes per block."""
    b128 = _round_up(batch, 128)
    if b128 <= 512:
        return b128
    blocks = max(2, 2 * (-(-b128 // (2 * MAX_TILE_B))))   # smallest even block count
    return _round_up(-(-b128 // blocks), 128)


def ifm_pallas(x_t, packed, tile_b):
    b_pad = x_t.shape[1]
    grid = (b_pad // tile_b,)
    const = lambda i: (0, 0)                    # resident weights: DMA'd once
    return pl.pallas_call(
        _ifm_kernel,
        out_shape=jax.ShapeDtypeStruct((1, b_pad), jnp.float32),
        grid=grid,
        in_specs=[
            pl.BlockSpec((XP, tile_b), lambda i: (0, i)),      # batch-tiled activations
            pl.BlockSpec(packed["w1t"].shape, const),
            pl.BlockSpec(packed["w2t"].shape, const),
            pl.BlockSpec(packed["wpt"].shape, const),
            pl.BlockSpec(packed["rbt"].shape, const),
            pl.BlockSpec(packed["rep"].shape, const),
            pl.BlockSpec(packed["keep"].shape, const),
            pl.BlockSpec(packed["dcol"].shape, const),
        ],
        out_specs=pl.BlockSpec((1, tile_b), lambda i: (0, i)),  # lane-dense logits row
        compiler_params=pltpu.CompilerParams(
            dimension_semantics=("parallel",),   # v7x: batch blocks split across TCs
            vmem_limit_bytes=32 * 1024 * 1024,
        ),
    )(x_t, packed["w1t"], packed["w2t"], packed["wpt"], packed["rbt"],
      packed["rep"], packed["keep"], packed["dcol"])


# ----------------------------- param packing ---------------------------------
def pack_params(params):
    """Fold the 9 small parameter tensors into lane-aligned resident kernel buffers."""
    w1, b1 = params["w1"], params["b1"]          # (E,H1), (1,H1)
    w2, b2 = params["w2"], params["b2"]          # (H1,H2), (1,H2)
    wp = params["wp"]                            # (H2,F)
    v = params["v"]                              # (E,K)
    wl_cont, wl_emb, bl = params["wl_cont"], params["wl_emb"], params["bl"]

    # W1^T with b1 on the constant-1 row; row H1 carries the 1 forward for b2.
    w1t = jnp.zeros((W1T_ROWS, XP), jnp.float32)
    w1t = w1t.at[0:H1, 0:EMB_OUT_DIM].set(w1.T)
    w1t = w1t.at[0:H1, ONES_ROW].set(b1[0])
    w1t = w1t.at[H1, ONES_ROW].set(1.0)

    # W2^T with b2 as the column multiplying h1's carried-one row.
    w2t = jnp.zeros((H2, W1T_ROWS), jnp.float32)
    w2t = w2t.at[:, 0:H1].set(w2.T)
    w2t = w2t.at[:, H1].set(b2[0])

    wpt = wp.T                                   # (F, H2)

    # FM V^T plus the final linear layer folded in as one extra sublane-aligned row.
    rbt = jnp.zeros((RB_ROWS, XP), jnp.float32)
    rbt = rbt.at[0:K_DIM, 0:EMB_OUT_DIM].set(v.T)
    rbt = rbt.at[LIN_ROW, 0:EMB_OUT_DIM].set(wl_emb[:, 0])
    rbt = rbt.at[LIN_ROW, EMB_OUT_DIM:EMB_OUT_DIM + N_CONT].set(wl_cont[:, 0])
    rbt = rbt.at[LIN_ROW, ONES_ROW].set(bl[0, 0])

    # resident constants: field-repeat matrix, cont/ones keep column, sum_k v^2 column.
    row = jnp.arange(XP)
    rep = (row[:, None] // EMB_DIM) == jnp.arange(N_FIELDS)[None, :]
    rep = (rep & (row[:, None] < EMB_OUT_DIM)).astype(jnp.float32)        # (XP, F)
    keep = ((row >= EMB_OUT_DIM) & (row <= ONES_ROW)).astype(jnp.float32)[:, None]
    dcol = jnp.sum(v * v, axis=1, keepdims=True)                          # (E, 1)

    return {
        "w1t": w1t,                              # f32: protects the softmax path
        "w2t": w2t,                              # f32 (b2/wp are O(1))
        "wpt": wpt,                              # f32
        "rbt": rbt.astype(jnp.bfloat16),         # bf16 MXU operand
        "rep": rep, "keep": keep, "dcol": dcol,  # f32 constants
    }


# ----------------------------- glue (plain JAX) -------------------------------
def embedding_lookup(deep_inputs, tables):
    """EmbeddingLayer: gather each categorical field's embedding -> (B, F, D)."""
    outs = []
    for (name, _, _), tbl in zip(DEEP_EMB_INPUTS, tables):
        idx = deep_inputs[:, DEEP_COLUMN_IDX[name]].astype(jnp.int32)
        outs.append(tbl[idx])                      # (B, D)
    return jnp.stack(outs, axis=1)                 # (B, F, D)


@jax.jit
def ifm_forward(deep_inputs, tables, packed):
    bsz = deep_inputs.shape[0]
    cont_idx = jnp.array([DEEP_COLUMN_IDX[c] for c in DEEP_CONTINUOUS_COLS], jnp.int32)
    cont = deep_inputs[:, cont_idx].astype(jnp.float32)                   # (B, C)
    emb = embedding_lookup(deep_inputs, tables).astype(jnp.float32)
    emb = emb.reshape(bsz, -1)                                            # (B, E)

    # activation slab: [emb | cont | 1 | zeros], stored bf16 (halves per-step DMA)
    x = jnp.zeros((bsz, XP), jnp.float32)
    x = x.at[:, 0:EMB_OUT_DIM].set(emb)
    x = x.at[:, EMB_OUT_DIM:EMB_OUT_DIM + N_CONT].set(cont)
    x = x.at[:, ONES_ROW].set(1.0)

    tile_b = _pick_tile(bsz)
    b_pad = _round_up(bsz, tile_b)
    x_t = jnp.pad(x, ((0, b_pad - bsz), (0, 0))).astype(jnp.bfloat16).T   # (XP, B_pad)
    out_row = ifm_pallas(x_t, packed, tile_b)                             # (1, B_pad)
    return out_row[:, :bsz].T                                             # (B, 1)


def ifm_reference(deep_inputs, tables, params):
    """Pure-JAX f32 reference reproducing the PyTorch forward, for validation."""
    cont_idx = jnp.array([DEEP_COLUMN_IDX[c] for c in DEEP_CONTINUOUS_COLS], jnp.int32)
    cont_outs = deep_inputs[:, cont_idx].astype(jnp.float32)
    emb_outs = embedding_lookup(deep_inputs, tables).astype(jnp.float32)  # (B,F,D)
    bsz = emb_outs.shape[0]

    dnn = emb_outs.reshape(bsz, -1)
    dnn = jnp.maximum(dnn @ params["w1"] + params["b1"], 0.0)
    dnn = jnp.maximum(dnn @ params["w2"] + params["b2"], 0.0)
    dnn = dnn @ params["wp"]                                              # (B, F)
    factor = NUM_COLS * jax.nn.softmax(dnn, axis=1)

    fm_inputs = (emb_outs * factor[:, :, None]).reshape(bsz, -1)          # (B, E)
    xv = fm_inputs @ params["v"]
    x2v2 = (fm_inputs ** 2) @ (params["v"] ** 2)
    fm_outputs = 0.5 * jnp.sum(xv ** 2 - x2v2, axis=1, keepdims=True)

    linear_inputs = jnp.concatenate([cont_outs, fm_inputs], axis=1)
    wl = jnp.concatenate([params["wl_cont"], params["wl_emb"]], axis=0)
    logits = linear_inputs @ wl + params["bl"]
    return logits + fm_outputs


# ----------------------------- param / input init ----------------------------
def init_params(key):
    ks = jax.random.split(key, 10)
    params = {
        "w1": 0.05 * jax.random.normal(ks[0], (EMB_OUT_DIM, H1), jnp.float32),
        "b1": 0.05 * jax.random.normal(ks[1], (1, H1), jnp.float32),
        "w2": 0.05 * jax.random.normal(ks[2], (H1, H2), jnp.float32),
        # larger b2/wp so the softmax is decisively non-uniform (better bug detectability)
        "b2": 1.00 * jax.random.normal(ks[3], (1, H2), jnp.float32),
        "wp": 1.00 * jax.random.normal(ks[4], (H2, N_FIELDS), jnp.float32),
        "v": 0.05 * jax.random.normal(ks[5], (EMB_OUT_DIM, K_DIM), jnp.float32),
        "wl_cont": 0.05 * jax.random.normal(ks[6], (N_CONT, 1), jnp.float32),
        "wl_emb": 0.05 * jax.random.normal(ks[7], (EMB_OUT_DIM, 1), jnp.float32),
        "bl": 0.05 * jax.random.normal(ks[8], (1, 1), jnp.float32),
    }
    tables = [
        0.05 * jax.random.normal(k, (vocab, dim), jnp.float32)
        for k, (_, vocab, dim) in zip(jax.random.split(ks[9], N_FIELDS),
                                      DEEP_EMB_INPUTS)
    ]
    return params, tables


def make_inputs(key, batch):
    kc, ki = jax.random.split(key)
    cont = jax.random.normal(kc, (batch, N_CONT), jnp.float32)
    cat_cols = []
    for k, (_, vocab, _) in zip(jax.random.split(ki, N_FIELDS), DEEP_EMB_INPUTS):
        cat_cols.append(jax.random.randint(k, (batch, 1), 0, vocab).astype(jnp.float32))
    # column order matches DEEP_COLUMN_IDX: cont_x, cont_y, cont_z, cat_a..cat_d
    return jnp.concatenate([cont] + cat_cols, axis=1)      # (batch, 7) == x['deep']


# ----------------------------- main -------------------------------------------
if __name__ == "__main__":
    root = jax.random.PRNGKey(0)
    k_params, k_small, k_big = jax.random.split(root, 3)

    params, tables = init_params(k_params)
    packed = pack_params(params)

    # tolerance: kernel stores the activation slab and FM/linear RHS in bf16
    # (perf review); reference is pure f32, so allow ~5e-3.
    RTOL = ATOL = 5e-3

    # small smoke test (single batch block)
    deep_small = make_inputs(k_small, 8)
    out_small = jax.block_until_ready(ifm_forward(deep_small, tables, packed))
    ref_small = ifm_reference(deep_small, tables, params)
    assert out_small.shape == (8, 1), out_small.shape
    assert jnp.allclose(out_small, ref_small, rtol=RTOL, atol=ATOL), (
        f"small-batch mismatch: {out_small.ravel()} vs {ref_small.ravel()}")

    # multi-block batch: exercises the even grid (2 x 640), padding and resident weights
    deep_big = make_inputs(k_big, 1280)
    out_big = jax.block_until_ready(ifm_forward(deep_big, tables, packed))
    ref_big = ifm_reference(deep_big, tables, params)
    assert out_big.shape == (1280, 1), out_big.shape
    assert jnp.allclose(out_big, ref_big, rtol=RTOL, atol=ATOL), "multi-block mismatch"

    print("KERNEL_OK")
</pallas_src>

<mosaic_0001>
module attributes {stable_mosaic.version = 11 : i64} {
  func.func @_ifm_kernel(%arg0: i32, %arg1: memref<64x128xbf16, #tpu.memory_space<vmem>>, %arg2: memref<40x64xf32, #tpu.memory_space<vmem>>, %arg3: memref<16x40xf32, #tpu.memory_space<vmem>>, %arg4: memref<4x16xf32, #tpu.memory_space<vmem>>, %arg5: memref<112x64xbf16, #tpu.memory_space<vmem>>, %arg6: memref<64x4xf32, #tpu.memory_space<vmem>>, %arg7: memref<64x1xf32, #tpu.memory_space<vmem>>, %arg8: memref<32x1xf32, #tpu.memory_space<vmem>>, %arg9: memref<1x128xf32, #tpu.memory_space<vmem>>) attributes {dimension_semantics = [#tpu.dimension_semantics<parallel>], iteration_bounds = array<i64: 1>, scalar_prefetch = 0 : i64, scratch_operands = 0 : i64, tpu.core_type = #tpu.core_type<tc>, window_params = [{transform_indices = @transform_0, window_bounds = array<i64: 64, 128>}, {pipeline_mode = #tpu.pipeline_mode<synchronous>, transform_indices = @transform_1, window_bounds = array<i64: 40, 64>}, {pipeline_mode = #tpu.pipeline_mode<synchronous>, transform_indices = @transform_2, window_bounds = array<i64: 16, 40>}, {pipeline_mode = #tpu.pipeline_mode<synchronous>, transform_indices = @transform_3, window_bounds = array<i64: 4, 16>}, {pipeline_mode = #tpu.pipeline_mode<synchronous>, transform_indices = @transform_4, window_bounds = array<i64: 112, 64>}, {pipeline_mode = #tpu.pipeline_mode<synchronous>, transform_indices = @transform_5, window_bounds = array<i64: 64, 4>}, {pipeline_mode = #tpu.pipeline_mode<synchronous>, transform_indices = @transform_6, window_bounds = array<i64: 64, 1>}, {pipeline_mode = #tpu.pipeline_mode<synchronous>, transform_indices = @transform_7, window_bounds = array<i64: 32, 1>}, {transform_indices = @transform_8, window_bounds = array<i64: 1, 128>}]} {
    %c0 = arith.constant 0 : index
    %c0_0 = arith.constant 0 : index
    %0 = vector.load %arg1[%c0, %c0_0] : memref<64x128xbf16, #tpu.memory_space<vmem>>, vector<64x128xbf16>
    %1 = arith.extf %0 : vector<64x128xbf16> to vector<64x128xf32>
    %c0_1 = arith.constant 0 : index
    %c0_2 = arith.constant 0 : index
    %2 = vector.load %arg2[%c0_1, %c0_2] : memref<40x64xf32, #tpu.memory_space<vmem>>, vector<40x64xf32>
    %cst = arith.constant dense<0.000000e+00> : vector<40x128xf32>
    %3 = tpu.matmul %2, %1, %cst {dimension_numbers = #tpu.dot_dimension_numbers<[1], [0], [0], [1], [0, 0, 1, 1], [], []>} : vector<40x64xf32>, vector<64x128xf32>, vector<40x128xf32> -> vector<40x128xf32>
    %cst_3 = arith.constant 0.000000e+00 : f32
    %4 = vector.broadcast %cst_3 : f32 to vector<40x128xf32>
    %5 = arith.maximumf %3, %4 : vector<40x128xf32>
    %c0_4 = arith.constant 0 : index
    %c0_5 = arith.constant 0 : index
    %6 = vector.load %arg3[%c0_4, %c0_5] : memref<16x40xf32, #tpu.memory_space<vmem>>, vector<16x40xf32>
    %cst_6 = arith.constant dense<0.000000e+00> : vector<16x128xf32>
    %7 = tpu.matmul %6, %5, %cst_6 {dimension_numbers = #tpu.dot_dimension_numbers<[1], [0], [0], [1], [0, 0, 1, 1], [], []>} : vector<16x40xf32>, vector<40x128xf32>, vector<16x128xf32> -> vector<16x128xf32>
    %cst_7 = arith.constant 0.000000e+00 : f32
    %8 = vector.broadcast %cst_7 : f32 to vector<16x128xf32>
    %9 = arith.maximumf %7, %8 : vector<16x128xf32>
    %c0_8 = arith.constant 0 : index
    %c0_9 = arith.constant 0 : index
    %10 = vector.load %arg4[%c0_8, %c0_9] : memref<4x16xf32, #tpu.memory_space<vmem>>, vector<4x16xf32>
    %cst_10 = arith.constant dense<0.000000e+00> : vector<4x128xf32>
    %11 = tpu.matmul %10, %9, %cst_10 {dimension_numbers = #tpu.dot_dimension_numbers<[1], [0], [0], [1], [0, 0, 1, 1], [], []>} : vector<4x16xf32>, vector<16x128xf32>, vector<4x128xf32> -> vector<4x128xf32>
    %cst_11 = arith.constant dense<0xFF800000> : vector<128xf32>
    %12 = vector.multi_reduction <maximumf>, %11, %cst_11 [0] : vector<4x128xf32> to vector<128xf32>
    %13 = vector.shape_cast %12 : vector<128xf32> to vector<1x128xf32>
    %14 = vector.broadcast %13 : vector<1x128xf32> to vector<4x128xf32>
    %15 = arith.subf %11, %14 : vector<4x128xf32>
    %16 = math.exp %15 : vector<4x128xf32>
    %cst_12 = arith.constant dense<0.000000e+00> : vector<128xf32>
    %17 = vector.multi_reduction <add>, %16, %cst_12 [0] : vector<4x128xf32> to vector<128xf32>
    %18 = vector.shape_cast %17 : vector<128xf32> to vector<1x128xf32>
    %19 = tpu.reciprocal %18 : vector<1x128xf32> -> vector<1x128xf32>
    %cst_13 = arith.constant 7.000000e+00 : f32
    %20 = vector.broadcast %cst_13 : f32 to vector<4x128xf32>
    %21 = arith.mulf %20, %16 : vector<4x128xf32>
    %22 = vector.broadcast %19 : vector<1x128xf32> to vector<4x128xf32>
    %23 = arith.mulf %21, %22 : vector<4x128xf32>
    %c0_14 = arith.constant 0 : index
    %c0_15 = arith.constant 0 : index
    %24 = vector.load %arg6[%c0_14, %c0_15] : memref<64x4xf32, #tpu.memory_space<vmem>>, vector<64x4xf32>
    %cst_16 = arith.constant dense<0.000000e+00> : vector<64x128xf32>
    %25 = tpu.matmul %24, %23, %cst_16 {dimension_numbers = #tpu.dot_dimension_numbers<[1], [0], [0], [1], [0, 0, 1, 1], [], []>} : vector<64x4xf32>, vector<4x128xf32>, vector<64x128xf32> -> vector<64x128xf32>
    %c0_17 = arith.constant 0 : index
    %c0_18 = arith.constant 0 : index
    %26 = vector.load %arg7[%c0_17, %c0_18] : memref<64x1xf32, #tpu.memory_space<vmem>>, vector<64x1xf32>
    %27 = vector.broadcast %26 : vector<64x1xf32> to vector<64x128xf32>
    %28 = arith.addf %25, %27 : vector<64x128xf32>
    %29 = arith.mulf %1, %28 : vector<64x128xf32>
    %c0_19 = arith.constant 0 : index
    %c0_20 = arith.constant 0 : index
    %30 = vector.load %arg5[%c0_19, %c0_20] : memref<112x64xbf16, #tpu.memory_space<vmem>>, vector<112x64xbf16>
    %31 = arith.truncf %29 : vector<64x128xf32> to vector<64x128xbf16>
    %cst_21 = arith.constant dense<0.000000e+00> : vector<112x128xf32>
    %32 = tpu.matmul %30, %31, %cst_21 {dimension_numbers = #tpu.dot_dimension_numbers<[1], [0], [0], [1], [0, 0, 1, 1], [], []>} : vector<112x64xbf16>, vector<64x128xbf16>, vector<112x128xf32> -> vector<112x128xf32>
    %33 = vector.extract_strided_slice %32 {offsets = [0, 0], sizes = [104, 128], strides = [1, 1]} : vector<112x128xf32> to vector<104x128xf32>
    %34 = vector.extract_strided_slice %32 {offsets = [104, 0], sizes = [8, 128], strides = [1, 1]} : vector<112x128xf32> to vector<8x128xf32>
    %cst_22 = arith.constant dense<0.000000e+00> : vector<128xf32>
    %35 = vector.multi_reduction <add>, %34, %cst_22 [0] : vector<8x128xf32> to vector<128xf32>
    %36 = vector.shape_cast %35 : vector<128xf32> to vector<1x128xf32>
    %37 = vector.extract_strided_slice %29 {offsets = [0, 0], sizes = [32, 128], strides = [1, 1]} : vector<64x128xf32> to vector<32x128xf32>
    %c0_23 = arith.constant 0 : index
    %c0_24 = arith.constant 0 : index
    %38 = vector.load %arg8[%c0_23, %c0_24] : memref<32x1xf32, #tpu.memory_space<vmem>>, vector<32x1xf32>
    %39 = vector.broadcast %38 : vector<32x1xf32> to vector<32x128xf32>
    %40 = arith.mulf %39, %37 : vector<32x128xf32>
    %41 = arith.mulf %40, %37 : vector<32x128xf32>
    %cst_25 = arith.constant dense<0.000000e+00> : vector<128xf32>
    %42 = vector.multi_reduction <add>, %41, %cst_25 [0] : vector<32x128xf32> to vector<128xf32>
    %43 = vector.shape_cast %42 : vector<128xf32> to vector<1x128xf32>
    %44 = arith.mulf %33, %33 : vector<104x128xf32>
    %cst_26 = arith.constant dense<0.000000e+00> : vector<128xf32>
    %45 = vector.multi_reduction <add>, %44, %cst_26 [0] : vector<104x128xf32> to vector<128xf32>
    %46 = vector.shape_cast %45 : vector<128xf32> to vector<1x128xf32>
    %47 = arith.subf %46, %43 : vector<1x128xf32>
    %cst_27 = arith.constant 5.000000e-01 : f32
    %48 = vector.broadcast %cst_27 : f32 to vector<1x128xf32>
    %49 = arith.mulf %48, %47 : vector<1x128xf32>
    %50 = arith.addf %49, %36 : vector<1x128xf32>
    %c0_28 = arith.constant 0 : index
    %c0_29 = arith.constant 0 : index
    %51 = vector.load %arg9[%c0_28, %c0_29] : memref<1x128xf32, #tpu.memory_space<vmem>>, vector<1x128xf32>
    tpu.vector_store %arg9[%c0_28, %c0_29], %50 {strides = array<i32>} : memref<1x128xf32, #tpu.memory_space<vmem>>, vector<1x128xf32>,
    return
  }
  func.func @transform_0(%arg0: i32) -> (i32, i32) {
    %c0_i32 = arith.constant 0 : i32
    %c0_i32_0 = arith.constant 0 : i32
    return %c0_i32, %arg0 : i32, i32
  }
  func.func @transform_1(%arg0: i32) -> (i32, i32) {
    %c0_i32 = arith.constant 0 : i32
    %c0_i32_0 = arith.constant 0 : i32
    %c0_i32_1 = arith.constant 0 : i32
    return %c0_i32, %c0_i32_0 : i32, i32
  }
  func.func @transform_2(%arg0: i32) -> (i32, i32) {
    %c0_i32 = arith.constant 0 : i32
    %c0_i32_0 = arith.constant 0 : i32
    %c0_i32_1 = arith.constant 0 : i32
    return %c0_i32, %c0_i32_0 : i32, i32
  }
  func.func @transform_3(%arg0: i32) -> (i32, i32) {
    %c0_i32 = arith.constant 0 : i32
    %c0_i32_0 = arith.constant 0 : i32
    %c0_i32_1 = arith.constant 0 : i32
    return %c0_i32, %c0_i32_0 : i32, i32
  }
  func.func @transform_4(%arg0: i32) -> (i32, i32) {
    %c0_i32 = arith.constant 0 : i32
    %c0_i32_0 = arith.constant 0 : i32
    %c0_i32_1 = arith.constant 0 : i32
    return %c0_i32, %c0_i32_0 : i32, i32
  }
  func.func @transform_5(%arg0: i32) -> (i32, i32) {
    %c0_i32 = arith.constant 0 : i32
    %c0_i32_0 = arith.constant 0 : i32
    %c0_i32_1 = arith.constant 0 : i32
    return %c0_i32, %c0_i32_0 : i32, i32
  }
  func.func @transform_6(%arg0: i32) -> (i32, i32) {
    %c0_i32 = arith.constant 0 : i32
    %c0_i32_0 = arith.constant 0 : i32
    %c0_i32_1 = arith.constant 0 : i32
    return %c0_i32, %c0_i32_0 : i32, i32
  }
  func.func @transform_7(%arg0: i32) -> (i32, i32) {
    %c0_i32 = arith.constant 0 : i32
    %c0_i32_0 = arith.constant 0 : i32
    %c0_i32_1 = arith.constant 0 : i32
    return %c0_i32, %c0_i32_0 : i32, i32
  }
  func.func @transform_8(%arg0: i32) -> (i32, i32) {
    %c0_i32 = arith.constant 0 : i32
    %c0_i32_0 = arith.constant 0 : i32
    return %c0_i32, %arg0 : i32, i32
  }
}

</mosaic_0001>

<llo_original>
// kernel: ifm_forward.1
$region0: #{ifm_forward.1}
  #allocation0 [shape = 'u32[]', space=smem, size = 0x4, offset = 0x4, fixed_abs, tag = 'smem constant byte address 0x4 - core index']
  #allocation1 [shape = 'u32[72,128]{1,0:T(1,128)}', space=vmem, size = 0x9000, scoped, tag = 'internal scratch']
  %s0 = inlined_call_operand.vmem [shape: bf16[64,128], index: 0, kind: input, shape index: {}]
  %s1 = inlined_call_operand.vmem [shape: f32[40,64], index: 1, kind: input, shape index: {}]
  %s2 = inlined_call_operand.vmem [shape: f32[16,40], index: 2, kind: input, shape index: {}]
  %s3 = inlined_call_operand.vmem [shape: f32[4,16], index: 3, kind: input, shape index: {}]
  %s4 = inlined_call_operand.vmem [shape: bf16[112,64], index: 4, kind: input, shape index: {}]
  %s5 = inlined_call_operand.vmem [shape: f32[64,4], index: 5, kind: input, shape index: {}]
  %s6 = inlined_call_operand.vmem [shape: f32[64,1], index: 6, kind: input, shape index: {}]
  %s7 = inlined_call_operand.vmem [shape: f32[32,1], index: 7, kind: input, shape index: {}]
  %s8 = inlined_call_operand.vmem [shape: f32[1,128], index: 8, kind: output, shape index: {}]
  %s9 = sld [smem:[#allocation0]]
  $region42: #{ifm_forward.1} parent=0
    _
  %s11 = ssub.s32 1, %s9
  %s12 = scalar_select 0, %s11, %s9
  // Predicated region
  $region2: #{ifm_forward.1} parent=0 // pred_check
    _
  $region3: #{ifm_forward.1} parent=0 // pred_check_branch
    %14 = sbr.rel (0) target = $region5
  $region4: #{ifm_forward.1} parent=0 // pred_region
    _
  $region5: #{ifm_forward.1} parent=0 // pred_fallthru
    _
  // Predicated region
  $region6: #{ifm_forward.1} parent=0 // pred_check
    _
  $region7: #{ifm_forward.1} parent=0 // pred_check_branch
    %16 = sbr.rel (0) target = $region9
  $region8: #{ifm_forward.1} parent=0 // pred_region
    _
  $region9: #{ifm_forward.1} parent=0 // pred_fallthru
    _
  // Predicated region
  $region10: #{ifm_forward.1} parent=0 // pred_check
    _
  $region11: #{ifm_forward.1} parent=0 // pred_check_branch
    %18 = sbr.rel (0) target = $region13
  $region12: #{ifm_forward.1} parent=0 // pred_region
    _
  $region13: #{ifm_forward.1} parent=0 // pred_fallthru
    _
  // Predicated region
  $region14: #{ifm_forward.1} parent=0 // pred_check
    _
  $region15: #{ifm_forward.1} parent=0 // pred_check_branch
    %20 = sbr.rel (0) target = $region17
  $region16: #{ifm_forward.1} parent=0 // pred_region
    _
  $region17: #{ifm_forward.1} parent=0 // pred_fallthru
    _
  // Predicated region
  $region18: #{ifm_forward.1} parent=0 // pred_check
    _
  $region19: #{ifm_forward.1} parent=0 // pred_check_branch
    %22 = sbr.rel (0) target = $region21
  $region20: #{ifm_forward.1} parent=0 // pred_region
    _
  $region21: #{ifm_forward.1} parent=0 // pred_fallthru
    _
  // Predicated region
  $region22: #{ifm_forward.1} parent=0 // pred_check
    _
  $region23: #{ifm_forward.1} parent=0 // pred_check_branch
    %24 = sbr.rel (0) target = $region25
  $region24: #{ifm_forward.1} parent=0 // pred_region
    _
  $region25: #{ifm_forward.1} parent=0 // pred_fallthru
    _
  // Predicated region
  $region26: #{ifm_forward.1} parent=0 // pred_check
    _
  $region27: #{ifm_forward.1} parent=0 // pred_check_branch
    %26 = sbr.rel (0) target = $region29
  $region28: #{ifm_forward.1} parent=0 // pred_region
    _
  $region29: #{ifm_forward.1} parent=0 // pred_fallthru
    _
  // Predicated region
  $region30: #{ifm_forward.1} parent=0 // pred_check
    _
  $region31: #{ifm_forward.1} parent=0 // pred_check_branch
    %28 = sbr.rel (0) target = $region33
  $region32: #{ifm_forward.1} parent=0 // pred_region
    _
  $region33: #{ifm_forward.1} parent=0 // pred_fallthru
    _
  %v30 = vld [vmem:[%s0] sm:$0xf]
  %v31 = vld [vmem:[%s0 + $0x4] sm:$0xf]
  %v32 = vld [vmem:[%s0 + $0x8] sm:$0xf]
  %v33 = vld [vmem:[%s0 + $0xc] sm:$0xf]
  %v34 = vld [vmem:[%s0 + $0x10] sm:$0xf]
  %v35 = vld [vmem:[%s0 + $0x14] sm:$0xf]
  %v36 = vld [vmem:[%s0 + $0x18] sm:$0xf]
  %v37 = vld [vmem:[%s0 + $0x1c] sm:$0xf]
  %v38 = vunpack.c.l.bf16 %v30
  %v39 = vunpack.c.l.bf16 %v31
  %v40 = vunpack.c.l.bf16 %v32
  %v41 = vunpack.c.l.bf16 %v33
  %v42 = vunpack.c.l.bf16 %v34
  %v43 = vunpack.c.l.bf16 %v35
  %v44 = vunpack.c.l.bf16 %v36
  %v45 = vunpack.c.l.bf16 %v37
  %v46 = vld [vmem:[%s1] sm:$0xff]
  %v47 = vld [vmem:[%s1 + $0x8] sm:$0xff]
  %v48 = vld [vmem:[%s1 + $0x10] sm:$0xff]
  %v49 = vld [vmem:[%s1 + $0x18] sm:$0xff]
  %v50 = vld [vmem:[%s1 + $0x20] sm:$0xff]
  %vm51 = vcmask 523264
  %v53 = vsel %vm51, %v46, 0
  %v56 = vsel %vm51, %v47, 0
  %v59 = vsel %vm51, %v48, 0
  %v62 = vsel %vm51, %v49, 0
  %v65 = vsel %vm51, %v50, 0
  %67 = vmatpush.msra.mxu0 0.0
  %68 = vmatpush.msra.mxu0 0.0
  %69 = vmatpush.msra.mxu0 0.0
  %70 = vmatpush.msra.mxu0 0.0
  %71 = vmatpush.msra.mxu0 0.0
  %72 = vmatpush.msra.mxu0 0.0
  %73 = vmatpush.msra.mxu0 0.0
  %74 = vmatpush.msra.mxu0 0.0
  %75 = vmatpush.msra.mxu0 %v45
  %76 = vmatpush.msra.mxu0 %v44
  %77 = vmatpush.msra.mxu0 %v43
  %78 = vmatpush.msra.mxu0 %v42
  %79 = vmatpush.msra.mxu0 %v41
  %80 = vmatpush.msra.mxu0 %v40
  %81 = vmatpush.msra.mxu0 %v39
  %82 = vmatpush.msra.mxu0 %v38
  %83 = vmatmul.f32.gmra.mxu0 %v53
  %v84 = vpop.f32.mrf.mxu0
  %v85 = vadd.f32 0.0, %v84
  %86 = vmatmul.f32.gmra.mxu0 %v56
  %v87 = vpop.f32.mrf.mxu0
  %v88 = vadd.f32 0.0, %v87
  %89 = vmatmul.f32.gmra.mxu0 %v59
  %v90 = vpop.f32.mrf.mxu0
  %v91 = vadd.f32 0.0, %v90
  %92 = vmatmul.f32.gmra.mxu0 %v62
  %v93 = vpop.f32.mrf.mxu0
  %v94 = vadd.f32 0.0, %v93
  %95 = vmatmul.f32.gmra.mxu0 %v65
  %v96 = vpop.f32.mrf.mxu0
  %v97 = vadd.f32 0.0, %v96
  %98 = vdwg.mxu0
  %v99 = vmax.f32 %v85, 0.0
  %v100 = vmax.f32 %v88, 0.0
  %v101 = vmax.f32 %v91, 0.0
  %v102 = vmax.f32 %v94, 0.0
  %v103 = vmax.f32 %v97, 0.0
  %v104 = vld [vmem:[%s2] sm:$0xff]
  %v105 = vld [vmem:[%s2 + $0x8] sm:$0xff]
  %vm106 = vcmask 326656
  %v108 = vsel %vm106, %v104, 0
  %v111 = vsel %vm106, %v105, 0
  %113 = vmatpush.msra.mxu0 0.0
  %114 = vmatpush.msra.mxu0 0.0
  %115 = vmatpush.msra.mxu0 0.0
  %116 = vmatpush.msra.mxu0 0.0
  %117 = vmatpush.msra.mxu0 0.0
  %118 = vmatpush.msra.mxu0 0.0
  %119 = vmatpush.msra.mxu0 0.0
  %120 = vmatpush.msra.mxu0 0.0
  %121 = vmatpush.msra.mxu0 0.0
  %122 = vmatpush.msra.mxu0 0.0
  %123 = vmatpush.msra.mxu0 0.0
  %124 = vmatpush.msra.mxu0 %v103
  %125 = vmatpush.msra.mxu0 %v102
  %126 = vmatpush.msra.mxu0 %v101
  %127 = vmatpush.msra.mxu0 %v100
  %128 = vmatpush.msra.mxu0 %v99
  %129 = vmatmul.f32.gmra.mxu0 %v108
  %v130 = vpop.f32.mrf.mxu0
  %v131 = vadd.f32 0.0, %v130
  %132 = vmatmul.f32.gmra.mxu0 %v111
  %v133 = vpop.f32.mrf.mxu0
  %v134 = vadd.f32 0.0, %v133
  %135 = vdwg.mxu0
  %v136 = vmax.f32 %v131, 0.0
  %v137 = vmax.f32 %v134, 0.0
  %v138 = vld [vmem:[%s3] sm:$0xf]
  %vm139 = vcmask 130048
  %v141 = vsel %vm139, %v138, 0
  %143 = vmatpush.msra.mxu0 0.0
  %144 = vmatpush.msra.mxu0 0.0
  %145 = vmatpush.msra.mxu0 0.0
  %146 = vmatpush.msra.mxu0 0.0
  %147 = vmatpush.msra.mxu0 0.0
  %148 = vmatpush.msra.mxu0 0.0
  %149 = vmatpush.msra.mxu0 0.0
  %150 = vmatpush.msra.mxu0 0.0
  %151 = vmatpush.msra.mxu0 0.0
  %152 = vmatpush.msra.mxu0 0.0
  %153 = vmatpush.msra.mxu0 0.0
  %154 = vmatpush.msra.mxu0 0.0
  %155 = vmatpush.msra.mxu0 0.0
  %156 = vmatpush.msra.mxu0 0.0
  %157 = vmatpush.msra.mxu0 %v137
  %158 = vmatpush.msra.mxu0 %v136
  %159 = vmatmul.f32.gmra.mxu0 %v141
  %v160 = vpop.f32.mrf.mxu0
  %v161 = vadd.f32 0.0, %v160
  %162 = vdwg.mxu0
  %vm163 = vcmask 1043456
  %v164 = vsel %vm163, %v161, -inf
  %v165 = vrot.slane %v164, 4
  %v166 = vmax.f32 %v164, %v165
  %v167 = vrot.slane %v166, 2
  %v168 = vmax.f32 %v166, %v167
  %v169 = vrot.slane %v168, 1
  %v170 = vmax.f32 %v168, %v169
  %v171 = vsub.f32 %v161, %v170
  %v172 = vmul.f32 %v171, 1.442695
  %v173 = vpow.pop %v172
  %v174 = vsel %vm163, %v173, 0.0
  %v175 = vrot.slane %v174, 4
  %v176 = vadd.f32 %v174, %v175
  %v177 = vrot.slane %v176, 2
  %v178 = vadd.f32 %v176, %v177
  %v179 = vrot.slane %v178, 1
  %v180 = vadd.f32 %v178, %v179
  %v181 = vrcp.pop %v180
  %v182 = vmul.f32 %v180, %v181
  %v183 = vsub.f32 1.0, %v182
  %v184 = vmul.f32 %v181, %v183
  %v185 = vadd.f32 %v181, %v184
  %vm186 = vweird.f32 %v180
  %vm187 = vweird.f32 %v181
  %vm188 = vmor %vm186, %vm187
  %v189 = vsel %vm188, %v181, %v185
  %v190 = vand.u32 2147483647, %v180
  %vm191 = vcmp.eq.f32.partialorder %v190, 8.507059e+37
  %v192 = vand.u32 %v180, 2147483648
  %v193 = vor.u32 1.1754944e-38, %v192
  %v194 = vsel %vm191, %v193, %v189
  %v195 = vmul.f32 %v173, 7.0
  %v196 = vmul.f32 %v195, %v194
  %v197 = vld [vmem:[%s5] sm:$0xff]
  %v198 = vld [vmem:[%s5 + $0x8] sm:$0xff]
  %v199 = vld [vmem:[%s5 + $0x10] sm:$0xff]
  %v200 = vld [vmem:[%s5 + $0x18] sm:$0xff]
  %v201 = vld [vmem:[%s5 + $0x20] sm:$0xff]
  %v202 = vld [vmem:[%s5 + $0x28] sm:$0xff]
  %v203 = vld [vmem:[%s5 + $0x30] sm:$0xff]
  %v204 = vld [vmem:[%s5 + $0x38] sm:$0xff]
  %v205 = vld [vmem:[%s6] sm:$0xff]
  %v206 = vld [vmem:[%s6 + $0x8] sm:$0xff]
  %v207 = vld [vmem:[%s6 + $0x10] sm:$0xff]
  %v208 = vld [vmem:[%s6 + $0x18] sm:$0xff]
  %v209 = vld [vmem:[%s6 + $0x20] sm:$0xff]
  %v210 = vld [vmem:[%s6 + $0x28] sm:$0xff]
  %v211 = vld [vmem:[%s6 + $0x30] sm:$0xff]
  %v212 = vld [vmem:[%s6 + $0x38] sm:$0xff]
  %214 = vset.pattern.permute.xlu0 0
  %215 = vperm.xlu0 %214, %v205
  %v216 = vpop.permute.xlu0 %215
  %219 = vset.pattern.permute.xlu0 0
  %220 = vperm.xlu0 %219, %v206
  %v221 = vpop.permute.xlu0 %220
  %224 = vset.pattern.permute.xlu0 0
  %225 = vperm.xlu0 %224, %v207
  %v226 = vpop.permute.xlu0 %225
  %229 = vset.pattern.permute.xlu0 0
  %230 = vperm.xlu0 %229, %v208
  %v231 = vpop.permute.xlu0 %230
  %234 = vset.pattern.permute.xlu0 0
  %235 = vperm.xlu0 %234, %v209
  %v236 = vpop.permute.xlu0 %235
  %239 = vset.pattern.permute.xlu0 0
  %240 = vperm.xlu0 %239, %v210
  %v241 = vpop.permute.xlu0 %240
  %244 = vset.pattern.permute.xlu0 0
  %245 = vperm.xlu0 %244, %v211
  %v246 = vpop.permute.xlu0 %245
  %249 = vset.pattern.permute.xlu0 0
  %250 = vperm.xlu0 %249, %v212
  %v251 = vpop.permute.xlu0 %250
  %vm253 = vcmask 31744
  %v255 = vsel %vm253, %v197, 0
  %v258 = vsel %vm253, %v198, 0
  %v261 = vsel %vm253, %v199, 0
  %v264 = vsel %vm253, %v200, 0
  %v267 = vsel %vm253, %v201, 0
  %v270 = vsel %vm253, %v202, 0
  %v273 = vsel %vm253, %v203, 0
  %v276 = vsel %vm253, %v204, 0
  %v279 = vsel %vm163, %v196, 0
  %281 = vmatpush.msra.mxu0 0.0
  %282 = vmatpush.msra.mxu0 0.0
  %283 = vmatpush.msra.mxu0 0.0
  %284 = vmatpush.msra.mxu0 0.0
  %285 = vmatpush.msra.mxu0 0.0
  %286 = vmatpush.msra.mxu0 0.0
  %287 = vmatpush.msra.mxu0 0.0
  %288 = vmatpush.msra.mxu0 0.0
  %289 = vmatpush.msra.mxu0 0.0
  %290 = vmatpush.msra.mxu0 0.0
  %291 = vmatpush.msra.mxu0 0.0
  %292 = vmatpush.msra.mxu0 0.0
  %293 = vmatpush.msra.mxu0 0.0
  %294 = vmatpush.msra.mxu0 0.0
  %295 = vmatpush.msra.mxu0 0.0
  %296 = vmatpush.msra.mxu0 %v279
  %297 = vmatmul.f32.gmra.mxu0 %v255
  %v298 = vpop.f32.mrf.mxu0
  %v299 = vadd.f32 %v216, %v298
  %300 = vmatmul.f32.gmra.mxu0 %v258
  %v301 = vpop.f32.mrf.mxu0
  %v302 = vadd.f32 %v221, %v301
  %303 = vmatmul.f32.gmra.mxu0 %v261
  %v304 = vpop.f32.mrf.mxu0
  %v305 = vadd.f32 %v226, %v304
  %306 = vmatmul.f32.gmra.mxu0 %v264
  %v307 = vpop.f32.mrf.mxu0
  %v308 = vadd.f32 %v231, %v307
  %309 = vmatmul.f32.gmra.mxu0 %v267
  %v310 = vpop.f32.mrf.mxu0
  %v311 = vadd.f32 %v236, %v310
  %312 = vmatmul.f32.gmra.mxu0 %v270
  %v313 = vpop.f32.mrf.mxu0
  %v314 = vadd.f32 %v241, %v313
  %315 = vmatmul.f32.gmra.mxu0 %v273
  %v316 = vpop.f32.mrf.mxu0
  %v317 = vadd.f32 %v246, %v316
  %318 = vmatmul.f32.gmra.mxu0 %v276
  %v319 = vpop.f32.mrf.mxu0
  %v320 = vadd.f32 %v251, %v319
  %321 = vdwg.mxu0
  %v322 = vmul.f32 %v38, %v299
  %v323 = vmul.f32 %v39, %v302
  %v324 = vmul.f32 %v40, %v305
  %v325 = vmul.f32 %v41, %v308
  %v326 = vmul.f32 %v42, %v311
  %v327 = vmul.f32 %v43, %v314
  %v328 = vmul.f32 %v44, %v317
  %v329 = vmul.f32 %v45, %v320
  %v330 = vld [vmem:[%s4] sm:$0xf]
  %v331 = vld [vmem:[%s4 + $0x4] sm:$0xf]
  %v332 = vld [vmem:[%s4 + $0x8] sm:$0xf]
  %v333 = vld [vmem:[%s4 + $0xc] sm:$0xf]
  %v334 = vld [vmem:[%s4 + $0x10] sm:$0xf]
  %v335 = vld [vmem:[%s4 + $0x14] sm:$0xf]
  %v336 = vld [vmem:[%s4 + $0x18] sm:$0xf]
  %v337 = vld [vmem:[%s4 + $0x1c] sm:$0xf]
  %v338 = vld [vmem:[%s4 + $0x20] sm:$0xf]
  %v339 = vld [vmem:[%s4 + $0x24] sm:$0xf]
  %v340 = vld [vmem:[%s4 + $0x28] sm:$0xf]
  %v341 = vld [vmem:[%s4 + $0x2c] sm:$0xf]
  %v342 = vld [vmem:[%s4 + $0x30] sm:$0xf]
  %v343 = vld [vmem:[%s4 + $0x34] sm:$0xf]
  %v344 = vpack.c.bf16 %v323, %v322
  %v345 = vpack.c.bf16 %v325, %v324
  %v346 = vpack.c.bf16 %v327, %v326
  %v347 = vpack.c.bf16 %v329, %v328
  %v362 = vunpack.c.l.b16 %v330
  %v363 = vunpack.c.l.b16 %v331
  %v364 = vunpack.c.l.b16 %v332
  %v365 = vunpack.c.l.b16 %v333
  %v366 = vunpack.c.l.b16 %v334
  %v367 = vunpack.c.l.b16 %v335
  %v368 = vunpack.c.l.b16 %v336
  %v369 = vunpack.c.l.b16 %v337
  %v370 = vunpack.c.l.b16 %v338
  %v371 = vunpack.c.l.b16 %v339
  %v372 = vunpack.c.l.b16 %v340
  %v373 = vunpack.c.l.b16 %v341
  %v374 = vunpack.c.l.b16 %v342
  %v375 = vunpack.c.l.b16 %v343
  %v376 = vpack.c.b16 %v363, %v362
  %v377 = vpack.c.b16 %v365, %v364
  %v378 = vpack.c.b16 %v367, %v366
  %v379 = vpack.c.b16 %v369, %v368
  %v380 = vpack.c.b16 %v371, %v370
  %v381 = vpack.c.b16 %v373, %v372
  %v382 = vpack.c.b16 %v375, %v374
  %v384 = vsel %vm51, %v376, 0
  %v387 = vsel %vm51, %v377, 0
  %v390 = vsel %vm51, %v378, 0
  %v393 = vsel %vm51, %v379, 0
  %v396 = vsel %vm51, %v380, 0
  %v399 = vsel %vm51, %v381, 0
  %v402 = vsel %vm51, %v382, 0
  %404 = vmatpush.bf16.msra.mxu0 0
  %405 = vmatpush.bf16.msra.mxu0 0
  %406 = vmatpush.bf16.msra.mxu0 0
  %407 = vmatpush.bf16.msra.mxu0 0
  %408 = vmatpush.bf16.msra.mxu0 %v347
  %409 = vmatpush.bf16.msra.mxu0 %v346
  %410 = vmatpush.bf16.msra.mxu0 %v345
  %411 = vmatpush.bf16.msra.mxu0 %v344
  %412 = vmatmul.bf16.gmra.mxu0 %v384
  %v413 = vpop.f32.mrf.mxu0
  %v414 = vadd.f32 0.0, %v413
  %v415 = vpop.f32.mrf.mxu0
  %v416 = vadd.f32 0.0, %v415
  %417 = vmatmul.bf16.gmra.mxu0 %v387
  %v418 = vpop.f32.mrf.mxu0
  %v419 = vadd.f32 0.0, %v418
  %v420 = vpop.f32.mrf.mxu0
  %v421 = vadd.f32 0.0, %v420
  %422 = vmatmul.bf16.gmra.mxu0 %v390
  %v423 = vpop.f32.mrf.mxu0
  %v424 = vadd.f32 0.0, %v423
  %v425 = vpop.f32.mrf.mxu0
  %v426 = vadd.f32 0.0, %v425
  %427 = vmatmul.bf16.gmra.mxu0 %v393
  %v428 = vpop.f32.mrf.mxu0
  %v429 = vadd.f32 0.0, %v428
  %v430 = vpop.f32.mrf.mxu0
  %v431 = vadd.f32 0.0, %v430
  %432 = vmatmul.bf16.gmra.mxu0 %v396
  %v433 = vpop.f32.mrf.mxu0
  %v434 = vadd.f32 0.0, %v433
  %v435 = vpop.f32.mrf.mxu0
  %v436 = vadd.f32 0.0, %v435
  %437 = vmatmul.bf16.gmra.mxu0 %v399
  %v438 = vpop.f32.mrf.mxu0
  %v439 = vadd.f32 0.0, %v438
  %v440 = vpop.f32.mrf.mxu0
  %v441 = vadd.f32 0.0, %v440
  %442 = vmatmul.bf16.gmra.mxu0 %v402
  %v443 = vpop.f32.mrf.mxu0
  %v444 = vadd.f32 0.0, %v443
  %v445 = vpop.f32.mrf.mxu0
  %v446 = vadd.f32 0.0, %v445
  %447 = vdwg.mxu0
  %v448 = vrot.slane %v446, 4
  %v449 = vadd.f32 %v446, %v448
  %v450 = vrot.slane %v449, 2
  %v451 = vadd.f32 %v449, %v450
  %v452 = vrot.slane %v451, 1
  %v453 = vadd.f32 %v451, %v452
  %v454 = vld [vmem:[%s7] sm:$0xff]
  %v455 = vld [vmem:[%s7 + $0x8] sm:$0xff]
  %v456 = vld [vmem:[%s7 + $0x10] sm:$0xff]
  %v457 = vld [vmem:[%s7 + $0x18] sm:$0xff]
  %459 = vset.pattern.permute.xlu0 0
  %460 = vperm.xlu0 %459, %v454
  %v461 = vpop.permute.xlu0 %460
  %464 = vset.pattern.permute.xlu0 0
  %465 = vperm.xlu0 %464, %v455
  %v466 = vpop.permute.xlu0 %465
  %469 = vset.pattern.permute.xlu0 0
  %470 = vperm.xlu0 %469, %v456
  %v471 = vpop.permute.xlu0 %470
  %474 = vset.pattern.permute.xlu0 0
  %475 = vperm.xlu0 %474, %v457
  %v476 = vpop.permute.xlu0 %475
  %v478 = vmul.f32 %v461, %v322
  %v479 = vmul.f32 %v466, %v323
  %v480 = vmul.f32 %v471, %v324
  %v481 = vmul.f32 %v476, %v325
  %v482 = vmul.f32 %v478, %v322
  %v483 = vmul.f32 %v479, %v323
  %v484 = vmul.f32 %v480, %v324
  %v485 = vmul.f32 %v481, %v325
  %v486 = vadd.f32 %v482, %v483
  %v487 = vadd.f32 %v486, %v484
  %v488 = vadd.f32 %v487, %v485
  %v489 = vrot.slane %v488, 4
  %v490 = vadd.f32 %v488, %v489
  %v491 = vrot.slane %v490, 2
  %v492 = vadd.f32 %v490, %v491
  %v493 = vrot.slane %v492, 1
  %v494 = vadd.f32 %v492, %v493
  %v495 = vmul.f32 %v414, %v414
  %v496 = vmul.f32 %v416, %v416
  %v497 = vmul.f32 %v419, %v419
  %v498 = vmul.f32 %v421, %v421
  %v499 = vmul.f32 %v424, %v424
  %v500 = vmul.f32 %v426, %v426
  %v501 = vmul.f32 %v429, %v429
  %v502 = vmul.f32 %v431, %v431
  %v503 = vmul.f32 %v434, %v434
  %v504 = vmul.f32 %v436, %v436
  %v505 = vmul.f32 %v439, %v439
  %v506 = vmul.f32 %v441, %v441
  %v507 = vmul.f32 %v444, %v444
  %v508 = vadd.f32 %v495, %v496
  %v509 = vadd.f32 %v508, %v497
  %v510 = vadd.f32 %v509, %v498
  %v511 = vadd.f32 %v510, %v499
  %v512 = vadd.f32 %v511, %v500
  %v513 = vadd.f32 %v512, %v501
  %v514 = vadd.f32 %v513, %v502
  %v515 = vadd.f32 %v514, %v503
  %v516 = vadd.f32 %v515, %v504
  %v517 = vadd.f32 %v516, %v505
  %v518 = vadd.f32 %v517, %v506
  %v519 = vadd.f32 %v518, %v507
  %v520 = vrot.slane %v519, 4
  %v521 = vadd.f32 %v519, %v520
  %v522 = vrot.slane %v521, 2
  %v523 = vadd.f32 %v521, %v522
  %v524 = vrot.slane %v523, 1
  %v525 = vadd.f32 %v523, %v524
  %v526 = vsub.f32 %v525, %v494
  %v527 = vmul.f32 %v526, 0.5
  %v528 = vadd.f32 %v527, %v453
  %529 = vst [vmem:[%s8] sm:$0x1] %v528
  // Predicated region
  $region34: #{ifm_forward.1} parent=0 // pred_check
    _
  $region35: #{ifm_forward.1} parent=0 // pred_check_branch
    %531 = sbr.rel (0) target = $region37
  $region36: #{ifm_forward.1} parent=0 // pred_region
    _
  $region37: #{ifm_forward.1} parent=0 // pred_fallthru
    _
  // Predicated region
  $region38: #{ifm_forward.1} parent=0 // pred_check
    _
  $region39: #{ifm_forward.1} parent=0 // pred_check_branch
    %533 = sbr.rel (0) target = $region41
  $region40: #{ifm_forward.1} parent=0 // pred_region
    _
  $region41: #{ifm_forward.1} parent=0 // pred_fallthru
    _

</llo_original>
